<compile_context>
chip_gen: v7x
topology: tpu7x:2x2x1
jax: 0.10.0
libtpu: 0.0.40
codegen_flags: <defaults>
</compile_context>

<pallas_src>
import math

import jax
import jax.numpy as jnp
from jax import lax
from jax.experimental import pallas as pl
from jax.experimental.pallas import tpu as pltpu

# ---------------- model dims (from the torch __init__) ----------------
INPUT_DIM = 4
HIDDEN = 256
N_HEAD = 8
HEAD_DIM = HIDDEN // N_HEAD          # 32
SEQ_LEN = 256
LN_EPS = 1e-5
SM_SCALE = 1.0 / math.sqrt(HEAD_DIM)

# ---------------- packed parameter slab (built once at init) ----------------
# rows 0..3 : w_emb (input_embedding weight, stored (IN, H))
# row  4    : b_emb
# row  5    : gamma1     row 6 : beta1
# row  7    : gamma2     row 8 : beta2
# row  9    : w_out (output_layer weight row)
# row 10    : b_out (scalar, replicated across lanes)
# rows 11..15 : zero padding (sublane dim a multiple of 8)
SLAB_ROWS = 16
_R_WEMB, _R_BEMB = 0, 4
_R_G1, _R_B1, _R_G2, _R_B2 = 5, 6, 7, 8
_R_WOUT, _R_BOUT = 9, 10


def pack_params(params):
    """Pack all weights into one (16, 256) f32 slab. Call ONCE at init time."""
    slab = jnp.zeros((SLAB_ROWS, HIDDEN), jnp.float32)
    slab = slab.at[_R_WEMB:_R_WEMB + INPUT_DIM, :].set(params["w_emb"])
    slab = slab.at[_R_BEMB, :].set(params["b_emb"])
    slab = slab.at[_R_G1, :].set(params["g1"])
    slab = slab.at[_R_B1, :].set(params["beta1"])
    slab = slab.at[_R_G2, :].set(params["g2"])
    slab = slab.at[_R_B2, :].set(params["beta2"])
    slab = slab.at[_R_WOUT, :].set(params["w_out"][0])
    slab = slab.at[_R_BOUT, :].set(jnp.full((HIDDEN,), params["b_out"][0, 0], jnp.float32))
    return slab


# ---------------- fp16 round-trip, emulated with f32/uint32 bit ops ----------------
def _f16_roundtrip(x):
    """Emulate x.astype(float16).astype(float32) (IEEE round-to-nearest-even).

    Normal f16 range: round the f32 mantissa to 10 bits via an integer add
    (carry into the exponent handled naturally).  f16-subnormal range
    (|x| < 2^-14): quantize to multiples of 2^-24 with the add/subtract-0.75
    trick.  Overflow (|x| > 65504) / NaN are unreachable: x is a LayerNorm
    output with |x| < sqrt(HIDDEN) ~ 16.
    """
    bits = pltpu.bitcast(x, jnp.uint32)
    lsb = (bits >> 13) & jnp.uint32(1)
    rounded = (bits + jnp.uint32(0x0FFF) + lsb) & jnp.uint32(0xFFFFE000)
    normal = pltpu.bitcast(rounded, jnp.float32)
    big = jnp.float32(0.75)                      # exponent -1 -> ulp = 2^-24
    sub = (x + big) - big
    return jnp.where(jnp.abs(x) < jnp.float32(2.0 ** -14), sub, normal)


# ---------------- single fused kernel ----------------
def _make_kernel(batch):
    def kernel(x_ref, p_ref, o_ref):
        # x_ref : SMEM (batch * INPUT_DIM,) f32   (8 scalars)
        # p_ref : VMEM (SLAB_ROWS, HIDDEN) f32    (all parameters, one DMA)
        # o_ref : VMEM (batch, 1) f32

        # input_embedding as unrolled rank-1 VPU accumulations (no MXU):
        #   h[b, :] = b_emb + sum_k x[b, k] * w_emb[k, :]
        b_emb = p_ref[_R_BEMB:_R_BEMB + 1, :]
        rows = []
        for b in range(batch):
            acc = b_emb
            for k in range(INPUT_DIM):
                w_row = p_ref[_R_WEMB + k:_R_WEMB + k + 1, :]
                acc = acc + x_ref[b * INPUT_DIM + k] * w_row
            rows.append(acc)
        h = jnp.concatenate(rows, axis=0) if batch > 1 else rows[0]   # (B, 256)

        # norm1
        mu = jnp.mean(h, axis=-1, keepdims=True)
        var = jnp.mean((h - mu) ** 2, axis=-1, keepdims=True)
        h = (h - mu) * lax.rsqrt(var + LN_EPS) * p_ref[_R_G1:_R_G1 + 1, :] \
            + p_ref[_R_B1:_R_B1 + 1, :]

        # torch: .to(float16) before attention.  Causal attention with q=k=v at
        # seq position 0 is the identity on v[:, :, 0, :] (softmax over one key
        # == 1.0), dropout is identity at inference, and only position 0 is
        # consumed, so fp16 rounding is the only surviving effect of attention.
        h = _f16_roundtrip(h)

        # x = x + x ; norm2
        z = h + h
        mu2 = jnp.mean(z, axis=-1, keepdims=True)
        var2 = jnp.mean((z - mu2) ** 2, axis=-1, keepdims=True)
        z = (z - mu2) * lax.rsqrt(var2 + LN_EPS) * p_ref[_R_G2:_R_G2 + 1, :] \
            + p_ref[_R_B2:_R_B2 + 1, :]

        # output_layer as a lane reduction (H=256 on lanes).
        # NOTE: for large B, switch to a lane-dense (1, B) output layout; at
        # B=2 the single masked store is irrelevant.
        o_ref[...] = (jnp.sum(z * p_ref[_R_WOUT:_R_WOUT + 1, :], axis=-1, keepdims=True)
                      + p_ref[_R_BOUT:_R_BOUT + 1, 0:1])
    return kernel


# ---------------- wrapper ----------------
def regression_model(x, param_slab):
    B = x.shape[0]
    out = pl.pallas_call(
        _make_kernel(B),
        out_shape=jax.ShapeDtypeStruct((B, 1), jnp.float32),
        in_specs=[pl.BlockSpec(memory_space=pltpu.MemorySpace.SMEM),   # x scalars
                  pl.BlockSpec(memory_space=pltpu.MemorySpace.VMEM)],  # param slab
        out_specs=pl.BlockSpec(memory_space=pltpu.MemorySpace.VMEM),
    )(x.reshape(-1), param_slab)
    return out[:, 0]                                       # squeeze(-1)


# ---------------- pure-JAX reference (full attention path, for validation) ----------------
def reference_forward(x, params):
    B = x.shape[0]
    y = x @ params["w_emb"] + params["b_emb"]
    mu = y.mean(-1, keepdims=True)
    var = ((y - mu) ** 2).mean(-1, keepdims=True)
    y = (y - mu) / jnp.sqrt(var + LN_EPS) * params["g1"] + params["beta1"]
    y = jnp.broadcast_to(y[:, None, :], (B, SEQ_LEN, HIDDEN)).astype(jnp.float16)
    qkv = y.reshape(B, SEQ_LEN, N_HEAD, HEAD_DIM).transpose(0, 2, 1, 3)
    q = qkv.astype(jnp.float32)
    s = jnp.einsum("bhqd,bhkd->bhqk", q, q) * SM_SCALE
    mask = jnp.tril(jnp.ones((SEQ_LEN, SEQ_LEN), bool))
    s = jnp.where(mask[None, None], s, -jnp.inf)
    p = jax.nn.softmax(s, axis=-1)
    o = jnp.einsum("bhqk,bhkd->bhqd", p, q).astype(jnp.float16)
    o = o.transpose(0, 2, 1, 3).reshape(B, SEQ_LEN, HIDDEN).astype(jnp.float32)
    z = o + o
    mu2 = z.mean(-1, keepdims=True)
    var2 = ((z - mu2) ** 2).mean(-1, keepdims=True)
    z = (z - mu2) / jnp.sqrt(var2 + LN_EPS) * params["g2"] + params["beta2"]
    z = z[:, 0, :]
    return (z @ params["w_out"].T + params["b_out"])[:, 0]


def init_params(key):
    k1, k2, k3, k4 = jax.random.split(key, 4)
    return {
        # nn.Linear(4, 256): stored transposed as (IN, H)
        "w_emb": jax.random.normal(k1, (INPUT_DIM, HIDDEN), jnp.float32) * 0.1,
        "b_emb": jax.random.normal(k2, (HIDDEN,), jnp.float32) * 0.01,
        # LayerNorm params (default init: gamma=1, beta=0)
        "g1": jnp.ones((HIDDEN,), jnp.float32),
        "beta1": jnp.zeros((HIDDEN,), jnp.float32),
        "g2": jnp.ones((HIDDEN,), jnp.float32),
        "beta2": jnp.zeros((HIDDEN,), jnp.float32),
        # nn.Linear(256, 1): weight kept as (1, H), bias as (1, 1)
        "w_out": jax.random.normal(k3, (1, HIDDEN), jnp.float32) * 0.1,
        "b_out": jax.random.normal(k4, (1, 1), jnp.float32) * 0.01,
    }


if __name__ == "__main__":
    key = jax.random.PRNGKey(0)
    k_params, k_x = jax.random.split(key)
    params = init_params(k_params)
    param_slab = jax.block_until_ready(pack_params(params))   # packed once at init
    x = jax.random.normal(k_x, (2, INPUT_DIM), jnp.float32)    # batch=2, input_dim=4

    out = jax.jit(regression_model)(x, param_slab)
    jax.block_until_ready(out)
    assert out.shape == (2,) and out.dtype == jnp.float32

    ref = reference_forward(x, params)
    assert jnp.allclose(out, ref, rtol=1e-3, atol=1e-3), (out, ref)

    print("KERNEL_OK")
</pallas_src>

<mosaic_0001>
module attributes {stable_mosaic.version = 11 : i64} {
  func.func @kernel(%arg0: memref<8xf32, #tpu.memory_space<smem>>, %arg1: memref<16x256xf32, #tpu.memory_space<vmem>>, %arg2: memref<2x1xf32, #tpu.memory_space<vmem>>) attributes {dimension_semantics = [], scalar_prefetch = 0 : i64, scratch_operands = 0 : i64, tpu.core_type = #tpu.core_type<tc>} {
    %c4 = arith.constant 4 : index
    %c0 = arith.constant 0 : index
    %0 = vector.load %arg1[%c4, %c0] : memref<16x256xf32, #tpu.memory_space<vmem>>, vector<1x256xf32>
    %c0_0 = arith.constant 0 : index
    %c0_1 = arith.constant 0 : index
    %1 = vector.load %arg1[%c0_0, %c0_1] : memref<16x256xf32, #tpu.memory_space<vmem>>, vector<1x256xf32>
    %c0_2 = arith.constant 0 : index
    %2 = memref.load %arg0[%c0_2] : memref<8xf32, #tpu.memory_space<smem>>
    %3 = vector.broadcast %2 : f32 to vector<1x256xf32>
    %4 = arith.mulf %3, %1 : vector<1x256xf32>
    %5 = arith.addf %0, %4 : vector<1x256xf32>
    %c1 = arith.constant 1 : index
    %c0_3 = arith.constant 0 : index
    %6 = vector.load %arg1[%c1, %c0_3] : memref<16x256xf32, #tpu.memory_space<vmem>>, vector<1x256xf32>
    %c1_4 = arith.constant 1 : index
    %7 = memref.load %arg0[%c1_4] : memref<8xf32, #tpu.memory_space<smem>>
    %8 = vector.broadcast %7 : f32 to vector<1x256xf32>
    %9 = arith.mulf %8, %6 : vector<1x256xf32>
    %10 = arith.addf %5, %9 : vector<1x256xf32>
    %c2 = arith.constant 2 : index
    %c0_5 = arith.constant 0 : index
    %11 = vector.load %arg1[%c2, %c0_5] : memref<16x256xf32, #tpu.memory_space<vmem>>, vector<1x256xf32>
    %c2_6 = arith.constant 2 : index
    %12 = memref.load %arg0[%c2_6] : memref<8xf32, #tpu.memory_space<smem>>
    %13 = vector.broadcast %12 : f32 to vector<1x256xf32>
    %14 = arith.mulf %13, %11 : vector<1x256xf32>
    %15 = arith.addf %10, %14 : vector<1x256xf32>
    %c3 = arith.constant 3 : index
    %c0_7 = arith.constant 0 : index
    %16 = vector.load %arg1[%c3, %c0_7] : memref<16x256xf32, #tpu.memory_space<vmem>>, vector<1x256xf32>
    %c3_8 = arith.constant 3 : index
    %17 = memref.load %arg0[%c3_8] : memref<8xf32, #tpu.memory_space<smem>>
    %18 = vector.broadcast %17 : f32 to vector<1x256xf32>
    %19 = arith.mulf %18, %16 : vector<1x256xf32>
    %20 = arith.addf %15, %19 : vector<1x256xf32>
    %c0_9 = arith.constant 0 : index
    %c0_10 = arith.constant 0 : index
    %21 = vector.load %arg1[%c0_9, %c0_10] : memref<16x256xf32, #tpu.memory_space<vmem>>, vector<1x256xf32>
    %c4_11 = arith.constant 4 : index
    %22 = memref.load %arg0[%c4_11] : memref<8xf32, #tpu.memory_space<smem>>
    %23 = vector.broadcast %22 : f32 to vector<1x256xf32>
    %24 = arith.mulf %23, %21 : vector<1x256xf32>
    %25 = arith.addf %0, %24 : vector<1x256xf32>
    %c1_12 = arith.constant 1 : index
    %c0_13 = arith.constant 0 : index
    %26 = vector.load %arg1[%c1_12, %c0_13] : memref<16x256xf32, #tpu.memory_space<vmem>>, vector<1x256xf32>
    %c5 = arith.constant 5 : index
    %27 = memref.load %arg0[%c5] : memref<8xf32, #tpu.memory_space<smem>>
    %28 = vector.broadcast %27 : f32 to vector<1x256xf32>
    %29 = arith.mulf %28, %26 : vector<1x256xf32>
    %30 = arith.addf %25, %29 : vector<1x256xf32>
    %c2_14 = arith.constant 2 : index
    %c0_15 = arith.constant 0 : index
    %31 = vector.load %arg1[%c2_14, %c0_15] : memref<16x256xf32, #tpu.memory_space<vmem>>, vector<1x256xf32>
    %c6 = arith.constant 6 : index
    %32 = memref.load %arg0[%c6] : memref<8xf32, #tpu.memory_space<smem>>
    %33 = vector.broadcast %32 : f32 to vector<1x256xf32>
    %34 = arith.mulf %33, %31 : vector<1x256xf32>
    %35 = arith.addf %30, %34 : vector<1x256xf32>
    %c3_16 = arith.constant 3 : index
    %c0_17 = arith.constant 0 : index
    %36 = vector.load %arg1[%c3_16, %c0_17] : memref<16x256xf32, #tpu.memory_space<vmem>>, vector<1x256xf32>
    %c7 = arith.constant 7 : index
    %37 = memref.load %arg0[%c7] : memref<8xf32, #tpu.memory_space<smem>>
    %38 = vector.broadcast %37 : f32 to vector<1x256xf32>
    %39 = arith.mulf %38, %36 : vector<1x256xf32>
    %40 = arith.addf %35, %39 : vector<1x256xf32>
    %41 = tpu.concatenate %20, %40 in 0 : vector<1x256xf32>, vector<1x256xf32> -> vector<2x256xf32>
    %cst = arith.constant dense<0.000000e+00> : vector<2xf32>
    %42 = vector.multi_reduction <add>, %41, %cst [1] : vector<2x256xf32> to vector<2xf32>
    %43 = vector.shape_cast %42 : vector<2xf32> to vector<2x1xf32>
    %cst_18 = arith.constant 2.560000e+02 : f32
    %44 = vector.broadcast %cst_18 : f32 to vector<2x1xf32>
    %45 = arith.divf %43, %44 : vector<2x1xf32>
    %46 = vector.broadcast %45 : vector<2x1xf32> to vector<2x256xf32>
    %47 = arith.subf %41, %46 : vector<2x256xf32>
    %48 = arith.mulf %47, %47 : vector<2x256xf32>
    %cst_19 = arith.constant dense<0.000000e+00> : vector<2xf32>
    %49 = vector.multi_reduction <add>, %48, %cst_19 [1] : vector<2x256xf32> to vector<2xf32>
    %50 = vector.shape_cast %49 : vector<2xf32> to vector<2x1xf32>
    %cst_20 = arith.constant 2.560000e+02 : f32
    %51 = vector.broadcast %cst_20 : f32 to vector<2x1xf32>
    %52 = arith.divf %50, %51 : vector<2x1xf32>
    %53 = vector.broadcast %45 : vector<2x1xf32> to vector<2x256xf32>
    %54 = arith.subf %41, %53 : vector<2x256xf32>
    %cst_21 = arith.constant 9.99999974E-6 : f32
    %55 = vector.broadcast %cst_21 : f32 to vector<2x1xf32>
    %56 = arith.addf %52, %55 : vector<2x1xf32>
    %57 = math.rsqrt %56 : vector<2x1xf32>
    %58 = vector.broadcast %57 : vector<2x1xf32> to vector<2x256xf32>
    %59 = arith.mulf %54, %58 : vector<2x256xf32>
    %c5_22 = arith.constant 5 : index
    %c0_23 = arith.constant 0 : index
    %60 = vector.load %arg1[%c5_22, %c0_23] : memref<16x256xf32, #tpu.memory_space<vmem>>, vector<1x256xf32>
    %61 = vector.broadcast %60 : vector<1x256xf32> to vector<2x256xf32>
    %62 = arith.mulf %59, %61 : vector<2x256xf32>
    %c6_24 = arith.constant 6 : index
    %c0_25 = arith.constant 0 : index
    %63 = vector.load %arg1[%c6_24, %c0_25] : memref<16x256xf32, #tpu.memory_space<vmem>>, vector<1x256xf32>
    %64 = vector.broadcast %63 : vector<1x256xf32> to vector<2x256xf32>
    %65 = arith.addf %62, %64 : vector<2x256xf32>
    %66 = tpu.bitcast %65 : vector<2x256xf32> -> vector<2x256xi32>
    %c13_i32 = arith.constant 13 : i32
    %67 = vector.broadcast %c13_i32 : i32 to vector<2x256xi32>
    %68 = arith.shrui %66, %67 : vector<2x256xi32>
    %c1_i32 = arith.constant 1 : i32
    %69 = vector.broadcast %c1_i32 : i32 to vector<2x256xi32>
    %70 = arith.andi %68, %69 : vector<2x256xi32>
    %c4095_i32 = arith.constant 4095 : i32
    %71 = vector.broadcast %c4095_i32 : i32 to vector<2x256xi32>
    %72 = arith.addi %66, %71 : vector<2x256xi32>
    %73 = arith.addi %72, %70 : vector<2x256xi32>
    %c-8192_i32 = arith.constant -8192 : i32
    %74 = vector.broadcast %c-8192_i32 : i32 to vector<2x256xi32>
    %75 = arith.andi %73, %74 : vector<2x256xi32>
    %76 = tpu.bitcast %75 : vector<2x256xi32> -> vector<2x256xf32>
    %cst_26 = arith.constant 7.500000e-01 : f32
    %77 = vector.broadcast %cst_26 : f32 to vector<2x256xf32>
    %78 = arith.addf %65, %77 : vector<2x256xf32>
    %cst_27 = arith.constant 7.500000e-01 : f32
    %79 = vector.broadcast %cst_27 : f32 to vector<2x256xf32>
    %80 = arith.subf %78, %79 : vector<2x256xf32>
    %81 = math.absf %65 : vector<2x256xf32>
    %cst_28 = arith.constant 6.10351563E-5 : f32
    %82 = vector.broadcast %cst_28 : f32 to vector<2x256xf32>
    %83 = arith.cmpf olt, %81, %82 : vector<2x256xf32>
    %84 = arith.select %83, %80, %76 : vector<2x256xi1>, vector<2x256xf32>
    %85 = arith.addf %84, %84 : vector<2x256xf32>
    %cst_29 = arith.constant dense<0.000000e+00> : vector<2xf32>
    %86 = vector.multi_reduction <add>, %85, %cst_29 [1] : vector<2x256xf32> to vector<2xf32>
    %87 = vector.shape_cast %86 : vector<2xf32> to vector<2x1xf32>
    %cst_30 = arith.constant 2.560000e+02 : f32
    %88 = vector.broadcast %cst_30 : f32 to vector<2x1xf32>
    %89 = arith.divf %87, %88 : vector<2x1xf32>
    %90 = vector.broadcast %89 : vector<2x1xf32> to vector<2x256xf32>
    %91 = arith.subf %85, %90 : vector<2x256xf32>
    %92 = arith.mulf %91, %91 : vector<2x256xf32>
    %cst_31 = arith.constant dense<0.000000e+00> : vector<2xf32>
    %93 = vector.multi_reduction <add>, %92, %cst_31 [1] : vector<2x256xf32> to vector<2xf32>
    %94 = vector.shape_cast %93 : vector<2xf32> to vector<2x1xf32>
    %cst_32 = arith.constant 2.560000e+02 : f32
    %95 = vector.broadcast %cst_32 : f32 to vector<2x1xf32>
    %96 = arith.divf %94, %95 : vector<2x1xf32>
    %97 = vector.broadcast %89 : vector<2x1xf32> to vector<2x256xf32>
    %98 = arith.subf %85, %97 : vector<2x256xf32>
    %cst_33 = arith.constant 9.99999974E-6 : f32
    %99 = vector.broadcast %cst_33 : f32 to vector<2x1xf32>
    %100 = arith.addf %96, %99 : vector<2x1xf32>
    %101 = math.rsqrt %100 : vector<2x1xf32>
    %102 = vector.broadcast %101 : vector<2x1xf32> to vector<2x256xf32>
    %103 = arith.mulf %98, %102 : vector<2x256xf32>
    %c7_34 = arith.constant 7 : index
    %c0_35 = arith.constant 0 : index
    %104 = vector.load %arg1[%c7_34, %c0_35] : memref<16x256xf32, #tpu.memory_space<vmem>>, vector<1x256xf32>
    %105 = vector.broadcast %104 : vector<1x256xf32> to vector<2x256xf32>
    %106 = arith.mulf %103, %105 : vector<2x256xf32>
    %c8 = arith.constant 8 : index
    %c0_36 = arith.constant 0 : index
    %107 = vector.load %arg1[%c8, %c0_36] : memref<16x256xf32, #tpu.memory_space<vmem>>, vector<1x256xf32>
    %108 = vector.broadcast %107 : vector<1x256xf32> to vector<2x256xf32>
    %109 = arith.addf %106, %108 : vector<2x256xf32>
    %c9 = arith.constant 9 : index
    %c0_37 = arith.constant 0 : index
    %110 = vector.load %arg1[%c9, %c0_37] : memref<16x256xf32, #tpu.memory_space<vmem>>, vector<1x256xf32>
    %111 = vector.broadcast %110 : vector<1x256xf32> to vector<2x256xf32>
    %112 = arith.mulf %109, %111 : vector<2x256xf32>
    %cst_38 = arith.constant dense<0.000000e+00> : vector<2xf32>
    %113 = vector.multi_reduction <add>, %112, %cst_38 [1] : vector<2x256xf32> to vector<2xf32>
    %114 = vector.shape_cast %113 : vector<2xf32> to vector<2x1xf32>
    %c10 = arith.constant 10 : index
    %c0_39 = arith.constant 0 : index
    %115 = vector.load %arg1[%c10, %c0_39] : memref<16x256xf32, #tpu.memory_space<vmem>>, vector<1x1xf32>
    %116 = vector.broadcast %115 : vector<1x1xf32> to vector<2x1xf32>
    %117 = arith.addf %114, %116 : vector<2x1xf32>
    %c0_40 = arith.constant 0 : index
    %c0_41 = arith.constant 0 : index
    %118 = vector.load %arg2[%c0_40, %c0_41] : memref<2x1xf32, #tpu.memory_space<vmem>>, vector<2x1xf32>
    tpu.vector_store %arg2[%c0_40, %c0_41], %117 {strides = array<i32>} : memref<2x1xf32, #tpu.memory_space<vmem>>, vector<2x1xf32>,
    return
  }
}

</mosaic_0001>

<llo_original>
// kernel: regression_model.1
$region0: #{regression_model.1}
  #allocation0 [shape = 'u32[]', space=smem, size = 0x4, offset = 0x4, fixed_abs, tag = 'smem constant byte address 0x4 - core index']
  #allocation1 [shape = 'u32[144,128]{1,0:T(1,128)}', space=vmem, size = 0x12000, scoped, tag = 'internal scratch']
  %s0 = inlined_call_operand.vmem [shape: f32[8], index: 0, kind: input, shape index: {}]
  %s1 = inlined_call_operand.hbm [shape: f32[16,256], index: 1, kind: input, shape index: {}]
  %s2 = inlined_call_operand.vmem [shape: f32[2,1], index: 2, kind: output, shape index: {}]
  %s3 = sld [smem:[#allocation0]]
  $region26: #{regression_model.1} parent=0
    _
  %s5 = ssub.s32 1, %s3
  %s6 = scalar_select 0, %s5, %s3
  $region1: #{regression_model.1} parent=0
    #allocation2 [shape = 'u8[512]{0}', space=smem, size = 0x200, scoped, tag = 'input window, operand 0, single buffered']
    #allocation3 [shape = 's32[1]{0}', space=sflag, size = 0x4, scoped, tag = 'scoped memory for regression_model.1']
    #allocation4 [shape = 's32[1]{0}', space=sflag, size = 0x4, scoped, tag = 'scoped memory for regression_model.1']
    #allocation5 [shape = 'u8[16384]{0}', space=vmem, size = 0x4000, scoped, tag = 'input window, operand 1, single buffered']
    %7 = vsyncpa [#allocation4], 0
    %8 = vsyncpa [#allocation3], 0
    // Predicated region
    $region2: #{regression_model.1} parent=1 // pred_check
      _
    $region3: #{regression_model.1} parent=1 // pred_check_branch
      %10 = sbr.rel (0) target = $region5
    $region4: #{regression_model.1} parent=1 // pred_region
      %s12 = ssub.s32 16, 16
      %13 = vsyncadd [#allocation4], %s12
      %s15 = sshll.u32 %s0, 4
      %s16 = int_to_ptr.vmem [resolvable:$true] %s15
      %18 = dma.vmem_to_smem %s16, 16, [#allocation2], [#allocation4]
    $region5: #{regression_model.1} parent=1 // pred_fallthru
      _
    // Predicated region
    $region6: #{regression_model.1} parent=1 // pred_check
      _
    $region7: #{regression_model.1} parent=1 // pred_check_branch
      %20 = sbr.rel (0) target = $region9
    $region8: #{regression_model.1} parent=1 // pred_region
      %s22 = ssub.s32 512, 512
      %23 = vsyncadd [#allocation3], %s22
      %s24 = sshll.u32 [#allocation5], 4
      %s25 = int_to_ptr.vmem [resolvable:$true] %s24
      %30 = dma.hbm_to_vmem [thread:$0]  %s1, 512, %s25, [#allocation3], 256, 256, 16
    $region9: #{regression_model.1} parent=1 // pred_fallthru
      _
    // Predicated region
    $region10: #{regression_model.1} parent=1 // pred_check
      _
    $region11: #{regression_model.1} parent=1 // pred_check_branch
      %32 = sbr.rel (0) target = $region13
    $region12: #{regression_model.1} parent=1 // pred_region
      %33 = dma.done [#allocation4], 16
    $region13: #{regression_model.1} parent=1 // pred_fallthru
      _
    // Predicated region
    $region14: #{regression_model.1} parent=1 // pred_check
      _
    $region15: #{regression_model.1} parent=1 // pred_check_branch
      %35 = sbr.rel (0) target = $region17
    $region16: #{regression_model.1} parent=1 // pred_region
      %36 = dma.done [#allocation3], 512
    $region17: #{regression_model.1} parent=1 // pred_fallthru
      _
    %37 = sfence
    %s38 = scalar_lea.vmem [#allocation5], 4
    %v39 = vld [vmem:[%s38] ss:$8 sm:$0x3]
    %v40 = vld [vmem:[#allocation5] ss:$8 sm:$0x3]
    %s41 = sld [smem:[#allocation2]]
    %v42 = vstv %s41
    %v43 = vmul.f32 %v42, %v40
    %v44 = vadd.f32 %v39, %v43
    %s45 = scalar_lea.vmem [#allocation5], 1
    %v46 = vld [vmem:[%s45] ss:$8 sm:$0x3]
    %s47 = sld [smem:[#allocation2 + $0x1]]
    %v48 = vstv %s47
    %v49 = vmul.f32 %v48, %v46
    %v50 = vadd.f32 %v44, %v49
    %s51 = scalar_lea.vmem [#allocation5], 2
    %v52 = vld [vmem:[%s51] ss:$8 sm:$0x3]
    %s53 = sld [smem:[#allocation2 + $0x2]]
    %v54 = vstv %s53
    %v55 = vmul.f32 %v54, %v52
    %v56 = vadd.f32 %v50, %v55
    %s57 = scalar_lea.vmem [#allocation5], 3
    %v58 = vld [vmem:[%s57] ss:$8 sm:$0x3]
    %s59 = sld [smem:[#allocation2 + $0x3]]
    %v60 = vstv %s59
    %v61 = vmul.f32 %v60, %v58
    %v62 = vadd.f32 %v56, %v61
    %s63 = sld [smem:[#allocation2 + $0x4]]
    %v64 = vstv %s63
    %v65 = vmul.f32 %v64, %v40
    %v66 = vadd.f32 %v39, %v65
    %s67 = sld [smem:[#allocation2 + $0x5]]
    %v68 = vstv %s67
    %v69 = vmul.f32 %v68, %v46
    %v70 = vadd.f32 %v66, %v69
    %s71 = sld [smem:[#allocation2 + $0x6]]
    %v72 = vstv %s71
    %v73 = vmul.f32 %v72, %v52
    %v74 = vadd.f32 %v70, %v73
    %s75 = sld [smem:[#allocation2 + $0x7]]
    %v76 = vstv %s75
    %v77 = vmul.f32 %v76, %v58
    %v78 = vadd.f32 %v74, %v77
    %v80 = vlaneseq
    %v81 = vshrl.u32 %v80, 7
    %v82 = vsub.s32 0, %v81
    %v83 = vrot.slane %v62, %v82
    %v84 = vlaneseq
    %v85 = vshrl.u32 %v84, 7
    %v86 = vsub.s32 1, %v85
    %v87 = vrot.slane %v62, %v86
    %v91 = vlaneseq
    %v92 = vshrl.u32 %v91, 7
    %v93 = vsub.s32 0, %v92
    %v94 = vrot.slane %v78, %v93
    %v95 = vlaneseq
    %v96 = vshrl.u32 %v95, 7
    %v97 = vsub.s32 1, %v96
    %v98 = vrot.slane %v78, %v97
    %vm101 = vcmask 1040384
    %v102 = vsel %vm101, %v83, %v94
    %v103 = vsel %vm101, %v87, %v98
    %vm104 = vcmask 1041408
    %v105 = vsel %vm104, %v102, 0.0
    %v106 = vsel %vm104, %v103, 0.0
    %v107 = vadd.f32 %v105, %v106
    %108 = vadd.xlane.f32.xlu0 %v107
    %v109 = vpop.xlane.xlu0 %108
    %v110 = vrcp.pop 256.0
    %v111 = vmul.f32 %v109, %v110
    %v112 = vsub.f32 %v102, %v111
    %v113 = vsub.f32 %v103, %v111
    %v114 = vmul.f32 %v112, %v112
    %v115 = vmul.f32 %v113, %v113
    %v116 = vsel %vm104, %v114, 0.0
    %v117 = vsel %vm104, %v115, 0.0
    %v118 = vadd.f32 %v116, %v117
    %119 = vadd.xlane.f32.xlu0 %v118
    %v120 = vpop.xlane.xlu0 %119
    %v121 = vmul.f32 %v120, %v110
    %v122 = vadd.f32 %v121, 1e-05
    %v123 = vrsqrt.pop %v122
    %v124 = vmul.f32 %v112, %v123
    %v125 = vmul.f32 %v113, %v123
    %s126 = scalar_lea.vmem [#allocation5], 5
    %v127 = vld [vmem:[%s126] ss:$8 sm:$0x3]
    %v129 = vlaneseq
    %v130 = vshrl.u32 %v129, 7
    %v131 = vsub.s32 0, %v130
    %v132 = vrot.slane %v127, %v131
    %v133 = vlaneseq
    %v134 = vshrl.u32 %v133, 7
    %v135 = vsub.s32 1, %v134
    %v136 = vrot.slane %v127, %v135
    %v139 = vmul.f32 %v124, %v132
    %v140 = vmul.f32 %v125, %v136
    %s141 = scalar_lea.vmem [#allocation5], 6
    %v142 = vld [vmem:[%s141] ss:$8 sm:$0x3]
    %v144 = vlaneseq
    %v145 = vshrl.u32 %v144, 7
    %v146 = vsub.s32 0, %v145
    %v147 = vrot.slane %v142, %v146
    %v148 = vlaneseq
    %v149 = vshrl.u32 %v148, 7
    %v150 = vsub.s32 1, %v149
    %v151 = vrot.slane %v142, %v150
    %v154 = vadd.f32 %v139, %v147
    %v155 = vadd.f32 %v140, %v151
    %v158 = vshrl.u32 %v154, 13
    %v159 = vshrl.u32 %v155, 13
    %v160 = vand.u32 %v158, 1
    %v161 = vand.u32 %v159, 1
    %v162 = vadd.s32 %v154, 4095
    %v163 = vadd.s32 %v155, 4095
    %v164 = vadd.s32 %v162, %v160
    %v165 = vadd.s32 %v163, %v161
    %v166 = vand.u32 %v164, 4294959104
    %v167 = vand.u32 %v165, 4294959104
    %v170 = vadd.f32 %v154, 0.75
    %v171 = vadd.f32 %v155, 0.75
    %v172 = vsub.f32 %v170, 0.75
    %v173 = vsub.f32 %v171, 0.75
    %v174 = vand.u32 2147483647, %v154
    %v175 = vand.u32 2147483647, %v155
    %vm176 = vcmp.lt.f32.partialorder %v174, 6.1035156e-05
    %vm177 = vcmp.lt.f32.partialorder %v175, 6.1035156e-05
    %v178 = vsel %vm176, %v172, %v166
    %v179 = vsel %vm177, %v173, %v167
    %v180 = vadd.f32 %v178, %v178
    %v181 = vadd.f32 %v179, %v179
    %v182 = vsel %vm104, %v180, 0.0
    %v183 = vsel %vm104, %v181, 0.0
    %v184 = vadd.f32 %v182, %v183
    %185 = vadd.xlane.f32.xlu0 %v184
    %v186 = vpop.xlane.xlu0 %185
    %v187 = vmul.f32 %v186, %v110
    %v188 = vsub.f32 %v180, %v187
    %v189 = vsub.f32 %v181, %v187
    %v190 = vmul.f32 %v188, %v188
    %v191 = vmul.f32 %v189, %v189
    %v192 = vsel %vm104, %v190, 0.0
    %v193 = vsel %vm104, %v191, 0.0
    %v194 = vadd.f32 %v192, %v193
    %195 = vadd.xlane.f32.xlu0 %v194
    %v196 = vpop.xlane.xlu0 %195
    %v197 = vmul.f32 %v196, %v110
    %v198 = vadd.f32 %v197, 1e-05
    %v199 = vrsqrt.pop %v198
    %v200 = vmul.f32 %v188, %v199
    %v201 = vmul.f32 %v189, %v199
    %s202 = scalar_lea.vmem [#allocation5], 7
    %v203 = vld [vmem:[%s202] ss:$8 sm:$0x3]
    %v205 = vlaneseq
    %v206 = vshrl.u32 %v205, 7
    %v207 = vsub.s32 0, %v206
    %v208 = vrot.slane %v203, %v207
    %v209 = vlaneseq
    %v210 = vshrl.u32 %v209, 7
    %v211 = vsub.s32 1, %v210
    %v212 = vrot.slane %v203, %v211
    %v215 = vmul.f32 %v200, %v208
    %v216 = vmul.f32 %v201, %v212
    %s217 = scalar_lea.vmem [#allocation5], 16
    %v218 = vld [vmem:[%s217] ss:$8 sm:$0x3]
    %v220 = vlaneseq
    %v221 = vshrl.u32 %v220, 7
    %v222 = vsub.s32 0, %v221
    %v223 = vrot.slane %v218, %v222
    %v224 = vlaneseq
    %v225 = vshrl.u32 %v224, 7
    %v226 = vsub.s32 1, %v225
    %v227 = vrot.slane %v218, %v226
    %v230 = vadd.f32 %v215, %v223
    %v231 = vadd.f32 %v216, %v227
    %s232 = scalar_lea.vmem [#allocation5], 17
    %v233 = vld [vmem:[%s232] ss:$8 sm:$0x3]
    %v235 = vlaneseq
    %v236 = vshrl.u32 %v235, 7
    %v237 = vsub.s32 0, %v236
    %v238 = vrot.slane %v233, %v237
    %v239 = vlaneseq
    %v240 = vshrl.u32 %v239, 7
    %v241 = vsub.s32 1, %v240
    %v242 = vrot.slane %v233, %v241
    %v245 = vmul.f32 %v230, %v238
    %v246 = vmul.f32 %v231, %v242
    %v247 = vsel %vm104, %v245, 0.0
    %v248 = vsel %vm104, %v246, 0.0
    %v249 = vadd.f32 %v247, %v248
    %250 = vadd.xlane.f32.xlu0 %v249
    %v251 = vpop.xlane.xlu0 %250
    %v252 = vld [vmem:[#allocation5 + $0x12] ss:$0 sm:$0xff]
    %v253 = vadd.f32 %v251, %v252
    %vm254 = vcmask 1024
    %255 = vst.msk [vmem:[%s2] sm:$0x3] %vm254, %v253
    // Predicated region
    $region18: #{regression_model.1} parent=1 // pred_check
      _
    $region19: #{regression_model.1} parent=1 // pred_check_branch
      %257 = sbr.rel (0) target = $region21
    $region20: #{regression_model.1} parent=1 // pred_region
      _
    $region21: #{regression_model.1} parent=1 // pred_fallthru
      _
    // Predicated region
    $region22: #{regression_model.1} parent=1 // pred_check
      _
    $region23: #{regression_model.1} parent=1 // pred_check_branch
      %259 = sbr.rel (0) target = $region25
    $region24: #{regression_model.1} parent=1 // pred_region
      _
    $region25: #{regression_model.1} parent=1 // pred_fallthru
      _
    %260 = vsyncpa [#allocation3], 1
    %261 = vsyncpa [#allocation4], 1

</llo_original>
